<compile_context>
chip_gen: v6e
topology: v6e:2x2x1
jax: 0.10.0
libtpu: 0.0.40
codegen_flags: <defaults>
</compile_context>

<pallas_src>
import jax
import jax.numpy as jnp
from jax import lax
from jax.experimental import pallas as pl
from jax.experimental.pallas import tpu as pltpu

EPS = 1e-5
K9 = 9
PAD = 4            # padding of the 9-tap conv
MAX_TILE_L = 512   # L-tile (lane) size for long sequences; multiple of 128


def _round_up(x, m):
    return (x + m - 1) // m * m


# ----------------------------- fused Pallas kernel -----------------------------

def _build_respath_kernel(num_blocks, filters, tile_l, halo, seq_len):
    """Kernel for one (batch, L-tile) grid point, running ALL ResPath blocks."""
    F = filters

    def kernel(x_ref, *rest):
        out_ref = rest[-1]
        prm = rest[:-1]                       # [wcomb_0, bpack_0, wcomb_1, bpack_1, ...]
        j = pl.program_id(1)

        act = x_ref[0, 0]                     # (Cp, W) f32, halo'ed, zero padded outside seq
        width = act.shape[1]
        for b in range(num_blocks):
            w_ref = prm[2 * b]                # (2F, K9*C)  BN-scale-folded conv weights
            p_ref = prm[2 * b + 1]            # (F, 4) = [b2, b1, s3, b3]
            wout = width - 2 * PAD
            # im2col along sublanes: row k*C + c = channel c shifted by tap k.
            xim = jnp.concatenate([act[:, k:k + wout] for k in range(K9)], axis=0)
            # single MXU matmul gives both the 9-tap conv (rows :F) and the 1x1
            # shortcut conv (rows F:), already scaled by their BN scales.
            res = jnp.dot(w_ref[...], xim, preferred_element_type=jnp.float32)
            pp = p_ref[...]
            main = jnp.maximum(res[:F] + pp[:, 0:1], 0.0)          # ReLU(BN2(conv9))
            short = res[F:] + pp[:, 1:2]                           # BN1(conv1x1)
            y = jnp.maximum(short + main, 0.0) * pp[:, 2:3] + pp[:, 3:4]  # BN3(ReLU(+))
            if b < num_blocks - 1:
                # Zero columns outside the true sequence so the next block's conv sees
                # PyTorch-style zero padding at the sequence ends (tile seams keep
                # their true halo values).
                start = j * tile_l - halo + PAD * (b + 1)
                pos = start + lax.broadcasted_iota(jnp.int32, (1, wout), 1)
                y = jnp.where((pos >= 0) & (pos < seq_len), y, 0.0)
            act = y
            width = wout
        out_ref[0] = act.astype(out_ref.dtype)                     # (F, tile_l)

    return kernel


@jax.jit
def respath_forward_pallas(x_ncl, params_list):
    """x_ncl: (N, Cin, L) PyTorch NCL layout. Returns (N, F, L)."""
    N, Cin, L = x_ncl.shape
    num_blocks = len(params_list)
    F = params_list[0]["bpack"].shape[0]
    halo = num_blocks * PAD
    Cp = params_list[0]["wcomb"].shape[1] // K9          # sublane-padded input channels

    if L <= MAX_TILE_L:
        tile_l, num_tiles = L, 1
    else:
        tile_l = MAX_TILE_L
        num_tiles = -(-L // tile_l)
    l_pad = num_tiles * tile_l
    W = tile_l + 2 * halo

    # One small pad/gather of the raw input only (channels -> Cp sublanes, L -> halo).
    # Intermediate activations are never padded or written back to HBM.
    xp = jnp.pad(x_ncl, ((0, 0), (0, Cp - Cin), (halo, halo + l_pad - L)))
    if num_tiles == 1:
        x_tiles = xp[:, None, :, :]                                   # (N, 1, Cp, W)
    else:
        cols = jnp.arange(num_tiles)[:, None] * tile_l + jnp.arange(W)[None, :]
        x_tiles = jnp.transpose(xp[:, :, cols], (0, 2, 1, 3))          # (N, nt, Cp, W)

    kernel = _build_respath_kernel(num_blocks, F, tile_l, halo, L)

    in_specs = [pl.BlockSpec((1, 1, Cp, W), lambda n, j: (n, j, 0, 0))]
    args = [x_tiles]
    for p in params_list:
        wc, bp = p["wcomb"], p["bpack"]
        in_specs.append(pl.BlockSpec(wc.shape, lambda n, j: (0, 0)))
        in_specs.append(pl.BlockSpec(bp.shape, lambda n, j: (0, 0)))
        args += [wc, bp]

    out = pl.pallas_call(
        kernel,
        out_shape=jax.ShapeDtypeStruct((N, F, l_pad), jnp.float32),
        grid_spec=pltpu.PrefetchScalarGridSpec(
            num_scalar_prefetch=0,
            grid=(N, num_tiles),
            in_specs=in_specs,
            out_specs=pl.BlockSpec((1, F, tile_l), lambda n, j: (n, 0, j)),
        ),
        compiler_params=pltpu.CompilerParams(
            dimension_semantics=("parallel", "parallel")),
    )(*args)
    return out[:, :, :L] if l_pad != L else out


# --------------------------- parameter setup ------------------------------

def _fold_bn(gamma, beta, mean, var):
    scale = gamma / jnp.sqrt(var + EPS)
    bias = beta - mean * scale
    return scale, bias


def _init_bn(key, c, affine):
    k1, k2, k3, k4 = jax.random.split(key, 4)
    if affine:
        gamma = 1.0 + 0.1 * jax.random.normal(k1, (c,), jnp.float32)
        beta = 0.1 * jax.random.normal(k2, (c,), jnp.float32)
    else:
        gamma = jnp.ones((c,), jnp.float32)
        beta = jnp.zeros((c,), jnp.float32)
    mean = 0.1 * jax.random.normal(k3, (c,), jnp.float32)
    var = 1.0 + 0.1 * jnp.abs(jax.random.normal(k4, (c,), jnp.float32))
    return gamma, beta, mean, var


def init_respath_block(key, in_channels, filters, in_pad=None):
    k_w1, k_w9, k_bn1, k_bn2, k_bn3 = jax.random.split(key, 5)
    # PyTorch Conv1d weight layout: (out, in, k)
    w1_oik = 0.2 * jax.random.normal(k_w1, (filters, in_channels, 1), jnp.float32)
    w9_oik = 0.1 * jax.random.normal(k_w9, (filters, in_channels, K9), jnp.float32)

    bn1 = _init_bn(k_bn1, filters, affine=True)    # conv1d_bn1: activation=None -> affine
    bn2 = _init_bn(k_bn2, filters, affine=False)   # conv1d_bn2: relu -> affine=False
    bn3 = _init_bn(k_bn3, filters, affine=True)    # final self.bn

    s1, b1 = _fold_bn(*bn1)
    s2, b2 = _fold_bn(*bn2)
    s3, b3 = _fold_bn(*bn3)

    F = filters
    Cp = in_channels if in_pad is None else in_pad

    # Combined weight (2F, K9*Cp): column layout [tap k, channel c] matching the
    # kernel's im2col row layout.  BN scales folded in.
    w9_kc = jnp.transpose(w9_oik, (0, 2, 1)) * s2[:, None, None]        # (F, K9, Cin)
    w9_kc = jnp.pad(w9_kc, ((0, 0), (0, 0), (0, Cp - in_channels)))      # (F, K9, Cp)
    main_rows = w9_kc.reshape(F, K9 * Cp)
    w1_c = s1[:, None] * w1_oik[:, :, 0]                                 # (F, Cin)
    w1_c = jnp.pad(w1_c, ((0, 0), (0, Cp - in_channels)))                # (F, Cp)
    short_rows = (jnp.zeros((F, K9, Cp), jnp.float32)
                  .at[:, PAD, :].set(w1_c)).reshape(F, K9 * Cp)          # center tap
    wcomb = jnp.concatenate([main_rows, short_rows], axis=0)             # (2F, K9*Cp)
    bpack = jnp.stack([b2, b1, s3, b3], axis=1)                          # (F, 4)

    return {
        # PyTorch layouts (for the reference path)
        "w1_oik": w1_oik, "w9_oik": w9_oik,
        "s1": s1[None], "b1": b1[None], "s2": s2[None], "b2": b2[None],
        "s3": s3[None], "b3": b3[None],
        # packed kernel params
        "wcomb": wcomb, "bpack": bpack,
    }


def init_respath(key, in_channels, filters, length):
    keys = jax.random.split(key, length)
    params = [init_respath_block(keys[0], in_channels, filters,
                                 in_pad=_round_up(in_channels, 8))]
    for i in range(1, length):
        params.append(init_respath_block(keys[i], filters, filters, in_pad=filters))
    return params


# --------------------------- pure-JAX reference -----------------------------

def _ref_bn(x_ncl, scale, bias):
    return x_ncl * scale[0][None, :, None] + bias[0][None, :, None]


def _ref_block(x_ncl, p):
    dn = ("NCH", "OIH", "NCH")
    sc = lax.conv_general_dilated(x_ncl, p["w1_oik"], (1,), "VALID",
                                  dimension_numbers=dn)
    sc = _ref_bn(sc, p["s1"], p["b1"])
    out = lax.conv_general_dilated(x_ncl, p["w9_oik"], (1,), [(PAD, PAD)],
                                   dimension_numbers=dn)
    out = jax.nn.relu(_ref_bn(out, p["s2"], p["b2"]))
    y = jax.nn.relu(sc + out)
    return _ref_bn(y, p["s3"], p["b3"])


def respath_forward_ref(x_ncl, params_list):
    x = x_ncl
    for p in params_list:
        x = _ref_block(x, p)
    return x


# ---------------------------------- main ------------------------------------

if __name__ == "__main__":
    key = jax.random.PRNGKey(0)
    k_x, k_p, k_x2, k_p2 = jax.random.split(key, 4)

    # Case 1: small shapes implied by the module.
    N, C_IN, L = 2, 4, 16
    FILTERS, LENGTH = 8, 3
    x = jax.random.normal(k_x, (N, C_IN, L), jnp.float32)     # PyTorch NCL input
    params = init_respath(k_p, C_IN, FILTERS, LENGTH)
    out = jax.block_until_ready(respath_forward_pallas(x, params))
    ref = respath_forward_ref(x, params)
    assert out.shape == (N, FILTERS, L), out.shape
    assert jnp.allclose(out, ref, rtol=1e-3, atol=1e-3), \
        f"max abs err {float(jnp.max(jnp.abs(out - ref)))}"

    # Case 2: long, non-tile-aligned sequence -> exercises L tiling with halos,
    # seam masking, output cropping, and channel sublane padding (Cin=3 -> 8).
    N2, C2, L2, F2, LEN2 = 1, 3, 1100, 8, 2
    x2 = jax.random.normal(k_x2, (N2, C2, L2), jnp.float32)
    params2 = init_respath(k_p2, C2, F2, LEN2)
    out2 = jax.block_until_ready(respath_forward_pallas(x2, params2))
    ref2 = respath_forward_ref(x2, params2)
    assert out2.shape == (N2, F2, L2), out2.shape
    assert jnp.allclose(out2, ref2, rtol=1e-3, atol=1e-3), \
        f"max abs err {float(jnp.max(jnp.abs(out2 - ref2)))}"

    print("KERNEL_OK")
</pallas_src>

<mosaic_0001>
module attributes {stable_mosaic.version = 11 : i64} {
  func.func @kernel(%arg0: i32, %arg1: i32, %arg2: memref<1x1x8x40xf32, #tpu.memory_space<vmem>>, %arg3: memref<16x72xf32, #tpu.memory_space<vmem>>, %arg4: memref<8x4xf32, #tpu.memory_space<vmem>>, %arg5: memref<16x72xf32, #tpu.memory_space<vmem>>, %arg6: memref<8x4xf32, #tpu.memory_space<vmem>>, %arg7: memref<16x72xf32, #tpu.memory_space<vmem>>, %arg8: memref<8x4xf32, #tpu.memory_space<vmem>>, %arg9: memref<1x8x16xf32, #tpu.memory_space<vmem>>) attributes {dimension_semantics = [#tpu.dimension_semantics<parallel>, #tpu.dimension_semantics<parallel>], iteration_bounds = array<i64: 2, 1>, scalar_prefetch = 0 : i64, scratch_operands = 0 : i64, tpu.core_type = #tpu.core_type<tc>, window_params = [{transform_indices = @transform_0, window_bounds = array<i64: 1, 1, 8, 40>}, {pipeline_mode = #tpu.pipeline_mode<synchronous>, transform_indices = @transform_1, window_bounds = array<i64: 16, 72>}, {pipeline_mode = #tpu.pipeline_mode<synchronous>, transform_indices = @transform_2, window_bounds = array<i64: 8, 4>}, {pipeline_mode = #tpu.pipeline_mode<synchronous>, transform_indices = @transform_3, window_bounds = array<i64: 16, 72>}, {pipeline_mode = #tpu.pipeline_mode<synchronous>, transform_indices = @transform_4, window_bounds = array<i64: 8, 4>}, {pipeline_mode = #tpu.pipeline_mode<synchronous>, transform_indices = @transform_5, window_bounds = array<i64: 16, 72>}, {pipeline_mode = #tpu.pipeline_mode<synchronous>, transform_indices = @transform_6, window_bounds = array<i64: 8, 4>}, {transform_indices = @transform_7, window_bounds = array<i64: 1, 8, 16>}]} {
    %c0 = arith.constant 0 : index
    %c0_0 = arith.constant 0 : index
    %c0_1 = arith.constant 0 : index
    %c0_2 = arith.constant 0 : index
    %0 = vector.load %arg2[%c0, %c0_0, %c0_1, %c0_2] : memref<1x1x8x40xf32, #tpu.memory_space<vmem>>, vector<1x1x8x40xf32>
    %1 = vector.shape_cast %0 : vector<1x1x8x40xf32> to vector<8x40xf32>
    %2 = vector.extract_strided_slice %1 {offsets = [0, 0], sizes = [8, 32], strides = [1, 1]} : vector<8x40xf32> to vector<8x32xf32>
    %3 = vector.extract_strided_slice %1 {offsets = [0, 1], sizes = [8, 32], strides = [1, 1]} : vector<8x40xf32> to vector<8x32xf32>
    %4 = vector.extract_strided_slice %1 {offsets = [0, 2], sizes = [8, 32], strides = [1, 1]} : vector<8x40xf32> to vector<8x32xf32>
    %5 = vector.extract_strided_slice %1 {offsets = [0, 3], sizes = [8, 32], strides = [1, 1]} : vector<8x40xf32> to vector<8x32xf32>
    %6 = vector.extract_strided_slice %1 {offsets = [0, 4], sizes = [8, 32], strides = [1, 1]} : vector<8x40xf32> to vector<8x32xf32>
    %7 = vector.extract_strided_slice %1 {offsets = [0, 5], sizes = [8, 32], strides = [1, 1]} : vector<8x40xf32> to vector<8x32xf32>
    %8 = vector.extract_strided_slice %1 {offsets = [0, 6], sizes = [8, 32], strides = [1, 1]} : vector<8x40xf32> to vector<8x32xf32>
    %9 = vector.extract_strided_slice %1 {offsets = [0, 7], sizes = [8, 32], strides = [1, 1]} : vector<8x40xf32> to vector<8x32xf32>
    %10 = vector.extract_strided_slice %1 {offsets = [0, 8], sizes = [8, 32], strides = [1, 1]} : vector<8x40xf32> to vector<8x32xf32>
    %11 = tpu.concatenate %2, %3, %4, %5, %6, %7, %8, %9, %10 in 0 : vector<8x32xf32>, vector<8x32xf32>, vector<8x32xf32>, vector<8x32xf32>, vector<8x32xf32>, vector<8x32xf32>, vector<8x32xf32>, vector<8x32xf32>, vector<8x32xf32> -> vector<72x32xf32>
    %c0_3 = arith.constant 0 : index
    %c0_4 = arith.constant 0 : index
    %12 = vector.load %arg3[%c0_3, %c0_4] : memref<16x72xf32, #tpu.memory_space<vmem>>, vector<16x72xf32>
    %cst = arith.constant dense<0.000000e+00> : vector<16x32xf32>
    %13 = tpu.matmul %12, %11, %cst {dimension_numbers = #tpu.dot_dimension_numbers<[1], [0], [0], [1], [0, 0, 1, 1], [], []>} : vector<16x72xf32>, vector<72x32xf32>, vector<16x32xf32> -> vector<16x32xf32>
    %c0_5 = arith.constant 0 : index
    %c0_6 = arith.constant 0 : index
    %14 = vector.load %arg4[%c0_5, %c0_6] : memref<8x4xf32, #tpu.memory_space<vmem>>, vector<8x4xf32>
    %15 = vector.extract_strided_slice %13 {offsets = [0, 0], sizes = [8, 32], strides = [1, 1]} : vector<16x32xf32> to vector<8x32xf32>
    %16 = vector.extract_strided_slice %14 {offsets = [0, 0], sizes = [8, 1], strides = [1, 1]} : vector<8x4xf32> to vector<8x1xf32>
    %17 = vector.broadcast %16 : vector<8x1xf32> to vector<8x32xf32>
    %18 = arith.addf %15, %17 : vector<8x32xf32>
    %cst_7 = arith.constant 0.000000e+00 : f32
    %19 = vector.broadcast %cst_7 : f32 to vector<8x32xf32>
    %20 = arith.maximumf %18, %19 : vector<8x32xf32>
    %21 = vector.extract_strided_slice %13 {offsets = [8, 0], sizes = [8, 32], strides = [1, 1]} : vector<16x32xf32> to vector<8x32xf32>
    %22 = vector.extract_strided_slice %14 {offsets = [0, 1], sizes = [8, 1], strides = [1, 1]} : vector<8x4xf32> to vector<8x1xf32>
    %23 = vector.broadcast %22 : vector<8x1xf32> to vector<8x32xf32>
    %24 = arith.addf %21, %23 : vector<8x32xf32>
    %25 = arith.addf %24, %20 : vector<8x32xf32>
    %cst_8 = arith.constant 0.000000e+00 : f32
    %26 = vector.broadcast %cst_8 : f32 to vector<8x32xf32>
    %27 = arith.maximumf %25, %26 : vector<8x32xf32>
    %28 = vector.extract_strided_slice %14 {offsets = [0, 2], sizes = [8, 1], strides = [1, 1]} : vector<8x4xf32> to vector<8x1xf32>
    %29 = vector.broadcast %28 : vector<8x1xf32> to vector<8x32xf32>
    %30 = arith.mulf %27, %29 : vector<8x32xf32>
    %31 = vector.extract_strided_slice %14 {offsets = [0, 3], sizes = [8, 1], strides = [1, 1]} : vector<8x4xf32> to vector<8x1xf32>
    %32 = vector.broadcast %31 : vector<8x1xf32> to vector<8x32xf32>
    %33 = arith.addf %30, %32 : vector<8x32xf32>
    %c16_i32 = arith.constant 16 : i32
    %34 = arith.muli %arg1, %c16_i32 : i32
    %c12_i32 = arith.constant 12 : i32
    %35 = arith.subi %34, %c12_i32 : i32
    %c4_i32 = arith.constant 4 : i32
    %36 = arith.addi %35, %c4_i32 : i32
    %37 = tpu.iota {dimensions = array<i32: 1>} : vector<1x32xi32>
    %38 = vector.broadcast %36 : i32 to vector<1x32xi32>
    %39 = arith.addi %38, %37 : vector<1x32xi32>
    %c0_i32 = arith.constant 0 : i32
    %40 = vector.broadcast %c0_i32 : i32 to vector<1x32xi32>
    %41 = arith.cmpi sge, %39, %40 : vector<1x32xi32>
    %c16_i32_9 = arith.constant 16 : i32
    %42 = vector.broadcast %c16_i32_9 : i32 to vector<1x32xi32>
    %43 = arith.cmpi slt, %39, %42 : vector<1x32xi32>
    %44 = arith.andi %41, %43 : vector<1x32xi1>
    %cst_10 = arith.constant 0.000000e+00 : f32
    %45 = vector.shape_cast %44 : vector<1x32xi1> to vector<1x32xi1>
    %46 = vector.broadcast %45 : vector<1x32xi1> to vector<8x32xi1>
    %47 = vector.broadcast %cst_10 : f32 to vector<8x32xf32>
    %48 = arith.select %46, %33, %47 : vector<8x32xi1>, vector<8x32xf32>
    %49 = vector.extract_strided_slice %48 {offsets = [0, 0], sizes = [8, 24], strides = [1, 1]} : vector<8x32xf32> to vector<8x24xf32>
    %50 = vector.extract_strided_slice %48 {offsets = [0, 1], sizes = [8, 24], strides = [1, 1]} : vector<8x32xf32> to vector<8x24xf32>
    %51 = vector.extract_strided_slice %48 {offsets = [0, 2], sizes = [8, 24], strides = [1, 1]} : vector<8x32xf32> to vector<8x24xf32>
    %52 = vector.extract_strided_slice %48 {offsets = [0, 3], sizes = [8, 24], strides = [1, 1]} : vector<8x32xf32> to vector<8x24xf32>
    %53 = vector.extract_strided_slice %48 {offsets = [0, 4], sizes = [8, 24], strides = [1, 1]} : vector<8x32xf32> to vector<8x24xf32>
    %54 = vector.extract_strided_slice %48 {offsets = [0, 5], sizes = [8, 24], strides = [1, 1]} : vector<8x32xf32> to vector<8x24xf32>
    %55 = vector.extract_strided_slice %48 {offsets = [0, 6], sizes = [8, 24], strides = [1, 1]} : vector<8x32xf32> to vector<8x24xf32>
    %56 = vector.extract_strided_slice %48 {offsets = [0, 7], sizes = [8, 24], strides = [1, 1]} : vector<8x32xf32> to vector<8x24xf32>
    %57 = vector.extract_strided_slice %48 {offsets = [0, 8], sizes = [8, 24], strides = [1, 1]} : vector<8x32xf32> to vector<8x24xf32>
    %58 = tpu.concatenate %49, %50, %51, %52, %53, %54, %55, %56, %57 in 0 : vector<8x24xf32>, vector<8x24xf32>, vector<8x24xf32>, vector<8x24xf32>, vector<8x24xf32>, vector<8x24xf32>, vector<8x24xf32>, vector<8x24xf32>, vector<8x24xf32> -> vector<72x24xf32>
    %c0_11 = arith.constant 0 : index
    %c0_12 = arith.constant 0 : index
    %59 = vector.load %arg5[%c0_11, %c0_12] : memref<16x72xf32, #tpu.memory_space<vmem>>, vector<16x72xf32>
    %cst_13 = arith.constant dense<0.000000e+00> : vector<16x24xf32>
    %60 = tpu.matmul %59, %58, %cst_13 {dimension_numbers = #tpu.dot_dimension_numbers<[1], [0], [0], [1], [0, 0, 1, 1], [], []>} : vector<16x72xf32>, vector<72x24xf32>, vector<16x24xf32> -> vector<16x24xf32>
    %c0_14 = arith.constant 0 : index
    %c0_15 = arith.constant 0 : index
    %61 = vector.load %arg6[%c0_14, %c0_15] : memref<8x4xf32, #tpu.memory_space<vmem>>, vector<8x4xf32>
    %62 = vector.extract_strided_slice %60 {offsets = [0, 0], sizes = [8, 24], strides = [1, 1]} : vector<16x24xf32> to vector<8x24xf32>
    %63 = vector.extract_strided_slice %61 {offsets = [0, 0], sizes = [8, 1], strides = [1, 1]} : vector<8x4xf32> to vector<8x1xf32>
    %64 = vector.broadcast %63 : vector<8x1xf32> to vector<8x24xf32>
    %65 = arith.addf %62, %64 : vector<8x24xf32>
    %cst_16 = arith.constant 0.000000e+00 : f32
    %66 = vector.broadcast %cst_16 : f32 to vector<8x24xf32>
    %67 = arith.maximumf %65, %66 : vector<8x24xf32>
    %68 = vector.extract_strided_slice %60 {offsets = [8, 0], sizes = [8, 24], strides = [1, 1]} : vector<16x24xf32> to vector<8x24xf32>
    %69 = vector.extract_strided_slice %61 {offsets = [0, 1], sizes = [8, 1], strides = [1, 1]} : vector<8x4xf32> to vector<8x1xf32>
    %70 = vector.broadcast %69 : vector<8x1xf32> to vector<8x24xf32>
    %71 = arith.addf %68, %70 : vector<8x24xf32>
    %72 = arith.addf %71, %67 : vector<8x24xf32>
    %cst_17 = arith.constant 0.000000e+00 : f32
    %73 = vector.broadcast %cst_17 : f32 to vector<8x24xf32>
    %74 = arith.maximumf %72, %73 : vector<8x24xf32>
    %75 = vector.extract_strided_slice %61 {offsets = [0, 2], sizes = [8, 1], strides = [1, 1]} : vector<8x4xf32> to vector<8x1xf32>
    %76 = vector.broadcast %75 : vector<8x1xf32> to vector<8x24xf32>
    %77 = arith.mulf %74, %76 : vector<8x24xf32>
    %78 = vector.extract_strided_slice %61 {offsets = [0, 3], sizes = [8, 1], strides = [1, 1]} : vector<8x4xf32> to vector<8x1xf32>
    %79 = vector.broadcast %78 : vector<8x1xf32> to vector<8x24xf32>
    %80 = arith.addf %77, %79 : vector<8x24xf32>
    %c16_i32_18 = arith.constant 16 : i32
    %81 = arith.muli %arg1, %c16_i32_18 : i32
    %c12_i32_19 = arith.constant 12 : i32
    %82 = arith.subi %81, %c12_i32_19 : i32
    %c8_i32 = arith.constant 8 : i32
    %83 = arith.addi %82, %c8_i32 : i32
    %84 = tpu.iota {dimensions = array<i32: 1>} : vector<1x24xi32>
    %85 = vector.broadcast %83 : i32 to vector<1x24xi32>
    %86 = arith.addi %85, %84 : vector<1x24xi32>
    %c0_i32_20 = arith.constant 0 : i32
    %87 = vector.broadcast %c0_i32_20 : i32 to vector<1x24xi32>
    %88 = arith.cmpi sge, %86, %87 : vector<1x24xi32>
    %c16_i32_21 = arith.constant 16 : i32
    %89 = vector.broadcast %c16_i32_21 : i32 to vector<1x24xi32>
    %90 = arith.cmpi slt, %86, %89 : vector<1x24xi32>
    %91 = arith.andi %88, %90 : vector<1x24xi1>
    %cst_22 = arith.constant 0.000000e+00 : f32
    %92 = vector.shape_cast %91 : vector<1x24xi1> to vector<1x24xi1>
    %93 = vector.broadcast %92 : vector<1x24xi1> to vector<8x24xi1>
    %94 = vector.broadcast %cst_22 : f32 to vector<8x24xf32>
    %95 = arith.select %93, %80, %94 : vector<8x24xi1>, vector<8x24xf32>
    %96 = vector.extract_strided_slice %95 {offsets = [0, 0], sizes = [8, 16], strides = [1, 1]} : vector<8x24xf32> to vector<8x16xf32>
    %97 = vector.extract_strided_slice %95 {offsets = [0, 1], sizes = [8, 16], strides = [1, 1]} : vector<8x24xf32> to vector<8x16xf32>
    %98 = vector.extract_strided_slice %95 {offsets = [0, 2], sizes = [8, 16], strides = [1, 1]} : vector<8x24xf32> to vector<8x16xf32>
    %99 = vector.extract_strided_slice %95 {offsets = [0, 3], sizes = [8, 16], strides = [1, 1]} : vector<8x24xf32> to vector<8x16xf32>
    %100 = vector.extract_strided_slice %95 {offsets = [0, 4], sizes = [8, 16], strides = [1, 1]} : vector<8x24xf32> to vector<8x16xf32>
    %101 = vector.extract_strided_slice %95 {offsets = [0, 5], sizes = [8, 16], strides = [1, 1]} : vector<8x24xf32> to vector<8x16xf32>
    %102 = vector.extract_strided_slice %95 {offsets = [0, 6], sizes = [8, 16], strides = [1, 1]} : vector<8x24xf32> to vector<8x16xf32>
    %103 = vector.extract_strided_slice %95 {offsets = [0, 7], sizes = [8, 16], strides = [1, 1]} : vector<8x24xf32> to vector<8x16xf32>
    %104 = vector.extract_strided_slice %95 {offsets = [0, 8], sizes = [8, 16], strides = [1, 1]} : vector<8x24xf32> to vector<8x16xf32>
    %105 = tpu.concatenate %96, %97, %98, %99, %100, %101, %102, %103, %104 in 0 : vector<8x16xf32>, vector<8x16xf32>, vector<8x16xf32>, vector<8x16xf32>, vector<8x16xf32>, vector<8x16xf32>, vector<8x16xf32>, vector<8x16xf32>, vector<8x16xf32> -> vector<72x16xf32>
    %c0_23 = arith.constant 0 : index
    %c0_24 = arith.constant 0 : index
    %106 = vector.load %arg7[%c0_23, %c0_24] : memref<16x72xf32, #tpu.memory_space<vmem>>, vector<16x72xf32>
    %cst_25 = arith.constant dense<0.000000e+00> : vector<16x16xf32>
    %107 = tpu.matmul %106, %105, %cst_25 {dimension_numbers = #tpu.dot_dimension_numbers<[1], [0], [0], [1], [0, 0, 1, 1], [], []>} : vector<16x72xf32>, vector<72x16xf32>, vector<16x16xf32> -> vector<16x16xf32>
    %c0_26 = arith.constant 0 : index
    %c0_27 = arith.constant 0 : index
    %108 = vector.load %arg8[%c0_26, %c0_27] : memref<8x4xf32, #tpu.memory_space<vmem>>, vector<8x4xf32>
    %109 = vector.extract_strided_slice %107 {offsets = [0, 0], sizes = [8, 16], strides = [1, 1]} : vector<16x16xf32> to vector<8x16xf32>
    %110 = vector.extract_strided_slice %108 {offsets = [0, 0], sizes = [8, 1], strides = [1, 1]} : vector<8x4xf32> to vector<8x1xf32>
    %111 = vector.broadcast %110 : vector<8x1xf32> to vector<8x16xf32>
    %112 = arith.addf %109, %111 : vector<8x16xf32>
    %cst_28 = arith.constant 0.000000e+00 : f32
    %113 = vector.broadcast %cst_28 : f32 to vector<8x16xf32>
    %114 = arith.maximumf %112, %113 : vector<8x16xf32>
    %115 = vector.extract_strided_slice %107 {offsets = [8, 0], sizes = [8, 16], strides = [1, 1]} : vector<16x16xf32> to vector<8x16xf32>
    %116 = vector.extract_strided_slice %108 {offsets = [0, 1], sizes = [8, 1], strides = [1, 1]} : vector<8x4xf32> to vector<8x1xf32>
    %117 = vector.broadcast %116 : vector<8x1xf32> to vector<8x16xf32>
    %118 = arith.addf %115, %117 : vector<8x16xf32>
    %119 = arith.addf %118, %114 : vector<8x16xf32>
    %cst_29 = arith.constant 0.000000e+00 : f32
    %120 = vector.broadcast %cst_29 : f32 to vector<8x16xf32>
    %121 = arith.maximumf %119, %120 : vector<8x16xf32>
    %122 = vector.extract_strided_slice %108 {offsets = [0, 2], sizes = [8, 1], strides = [1, 1]} : vector<8x4xf32> to vector<8x1xf32>
    %123 = vector.broadcast %122 : vector<8x1xf32> to vector<8x16xf32>
    %124 = arith.mulf %121, %123 : vector<8x16xf32>
    %125 = vector.extract_strided_slice %108 {offsets = [0, 3], sizes = [8, 1], strides = [1, 1]} : vector<8x4xf32> to vector<8x1xf32>
    %126 = vector.broadcast %125 : vector<8x1xf32> to vector<8x16xf32>
    %127 = arith.addf %124, %126 : vector<8x16xf32>
    %c0_30 = arith.constant 0 : index
    %c0_31 = arith.constant 0 : index
    %c0_32 = arith.constant 0 : index
    %128 = vector.load %arg9[%c0_30, %c0_31, %c0_32] : memref<1x8x16xf32, #tpu.memory_space<vmem>>, vector<1x8x16xf32>
    %129 = vector.shape_cast %128 : vector<1x8x16xf32> to vector<8x16xf32>
    %130 = vector.shape_cast %127 : vector<8x16xf32> to vector<1x8x16xf32>
    tpu.vector_store %arg9[%c0_30, %c0_31, %c0_32], %130 {strides = array<i32>} : memref<1x8x16xf32, #tpu.memory_space<vmem>>, vector<1x8x16xf32>,
    return
  }
  func.func @transform_0(%arg0: i32, %arg1: i32) -> (i32, i32, i32, i32) {
    %c0_i32 = arith.constant 0 : i32
    %c0_i32_0 = arith.constant 0 : i32
    %c0_i32_1 = arith.constant 0 : i32
    return %arg0, %arg1, %c0_i32, %c0_i32_0 : i32, i32, i32, i32
  }
  func.func @transform_1(%arg0: i32, %arg1: i32) -> (i32, i32) {
    %c0_i32 = arith.constant 0 : i32
    %c0_i32_0 = arith.constant 0 : i32
    %c0_i32_1 = arith.constant 0 : i32
    return %c0_i32, %c0_i32_0 : i32, i32
  }
  func.func @transform_2(%arg0: i32, %arg1: i32) -> (i32, i32) {
    %c0_i32 = arith.constant 0 : i32
    %c0_i32_0 = arith.constant 0 : i32
    %c0_i32_1 = arith.constant 0 : i32
    return %c0_i32, %c0_i32_0 : i32, i32
  }
  func.func @transform_3(%arg0: i32, %arg1: i32) -> (i32, i32) {
    %c0_i32 = arith.constant 0 : i32
    %c0_i32_0 = arith.constant 0 : i32
    %c0_i32_1 = arith.constant 0 : i32
    return %c0_i32, %c0_i32_0 : i32, i32
  }
  func.func @transform_4(%arg0: i32, %arg1: i32) -> (i32, i32) {
    %c0_i32 = arith.constant 0 : i32
    %c0_i32_0 = arith.constant 0 : i32
    %c0_i32_1 = arith.constant 0 : i32
    return %c0_i32, %c0_i32_0 : i32, i32
  }
  func.func @transform_5(%arg0: i32, %arg1: i32) -> (i32, i32) {
    %c0_i32 = arith.constant 0 : i32
    %c0_i32_0 = arith.constant 0 : i32
    %c0_i32_1 = arith.constant 0 : i32
    return %c0_i32, %c0_i32_0 : i32, i32
  }
  func.func @transform_6(%arg0: i32, %arg1: i32) -> (i32, i32) {
    %c0_i32 = arith.constant 0 : i32
    %c0_i32_0 = arith.constant 0 : i32
    %c0_i32_1 = arith.constant 0 : i32
    return %c0_i32, %c0_i32_0 : i32, i32
  }
  func.func @transform_7(%arg0: i32, %arg1: i32) -> (i32, i32, i32) {
    %c0_i32 = arith.constant 0 : i32
    %c0_i32_0 = arith.constant 0 : i32
    return %arg0, %c0_i32, %arg1 : i32, i32, i32
  }
}

</mosaic_0001>

<llo_original>
// kernel: respath_forward_pallas.1
$region0: #{respath_forward_pallas.1}
  #allocation0 [shape = 'u32[]', space=smem, size = 0x4, offset = 0x4, fixed_abs, tag = 'smem constant byte address 0x4 - core index']
  #allocation1 [shape = 'u32[144,128]{1,0:T(1,128)}', space=vmem, size = 0x12000, scoped, tag = 'internal scratch']
  %s0 = inlined_call_operand.vmem [shape: f32[2,1,8,40], index: 0, kind: input, shape index: {}]
  %s1 = inlined_call_operand.vmem [shape: f32[16,72], index: 1, kind: input, shape index: {}]
  %s2 = inlined_call_operand.vmem [shape: f32[8,4], index: 2, kind: input, shape index: {}]
  %s3 = inlined_call_operand.vmem [shape: f32[16,72], index: 3, kind: input, shape index: {}]
  %s4 = inlined_call_operand.vmem [shape: f32[8,4], index: 4, kind: input, shape index: {}]
  %s5 = inlined_call_operand.vmem [shape: f32[16,72], index: 5, kind: input, shape index: {}]
  %s6 = inlined_call_operand.vmem [shape: f32[8,4], index: 6, kind: input, shape index: {}]
  %s7 = inlined_call_operand.hbm [shape: f32[2,8,16], index: 7, kind: output, shape index: {}]
  %s8 = sld [smem:[#allocation0]]
  $region61: #{respath_forward_pallas.1} parent=0
    _
  %s10 = ssub.s32 1, %s8
  %s11 = scalar_select 0, %s10, %s8
  $region1: #{respath_forward_pallas.1} parent=0
    #allocation2 [shape = 'u8[8192]{0}', space=vmem, size = 0x2000, scoped, tag = 'output window, operand 0']
    #allocation3 [shape = 's32[2]{0}', space=sflag, size = 0x8, scoped, tag = 'scoped memory for respath_forward_pallas.1']
    %12 = vsyncpa [#allocation3], 0
    %s13 = scalar_lea.sflag [#allocation3], 1
    %14 = vsyncpa %s13, 0
    loop: start=0, step=1, limit=4
    $region2: #{respath_forward_pallas.1} parent=1 // loop_pre_header
      _
    $region3: #{respath_forward_pallas.1} parent=1 // loop_header
      %s16 = sphi 0, %s20
      %p17 = scmp.ge.s32.totalorder %s16, 4
      %s23 = sphi 0, %s35
      %s24 = sphi 0, %s31
      %s25 = sphi 0, %s23
      %s26 = sphi 0, %s24
      %s27 = sphi 0, %s25
      %s28 = sphi 0, %s26
      %s40 = sphi 0, %s42
      %s43 = sphi 0, %s40
      %s44 = sphi 0, %s43
      %s60 = sphi 0, %s44
      %s64 = sphi 0, %s64
      %s66 = sphi 0, %s64
      %s67 = sphi 0, %s66
      %s81 = sphi 0, %s67
      %s85 = sphi 0, %s85
      %s87 = sphi 0, %s85
      %s88 = sphi 0, %s87
      %s102 = sphi 0, %s88
      %s106 = sphi 0, %s106
      %s108 = sphi 0, %s106
      %s109 = sphi 0, %s108
      %s123 = sphi 0, %s109
      %s127 = sphi 0, %s127
      %s129 = sphi 0, %s127
      %s130 = sphi 0, %s129
      %s144 = sphi 0, %s130
      %s148 = sphi 0, %s148
      %s150 = sphi 0, %s148
      %s151 = sphi 0, %s150
      %s165 = sphi 0, %s151
      %s169 = sphi 0, %s169
      %s171 = sphi 0, %s169
      %s172 = sphi 0, %s171
      %s186 = sphi 0, %s172
      %s194 = sphi 0, %s196
      %s197 = sphi 0, %s194
      %s198 = sphi 0, %s197
      %s214 = sphi 0, %s198
    $region4: #{respath_forward_pallas.1} parent=1 // loop_header_branch
      %19 = sbr.rel (%p17) target = $region8
    $region5: #{respath_forward_pallas.1} parent=1 // loop_body
      %s21 = ssub.s32 %s16, 1
      %s22 = ssub.s32 %s16, 2
      %s29 = sadd.s32 1, %s24
      %p30 = scmp.ge.s32.totalorder %s29, 1
      %s31 = scalar_select %p30, 0, %s29
      %s32 = sadd.s32 1, %s23
      %s33 = scalar_select %p30, %s32, %s23
      %p34 = scmp.ge.s32.totalorder %s33, 2
      %s35 = scalar_select %p34, 0, %s33
      %s36 = ssub.s32 %s23, %s35
      %s37 = ssub.s32 %s24, %s31
      %s38 = sor.u32 %s36, %s37
      %p39 = scmp.eq.s32.totalorder %s38, 0
      %s41 = sadd.s32 %s40, 1
      %s42 = scalar_select %p39, %s40, %s41
      %p45 = pneg %p39
      %p46 = scmp.eq.s32.totalorder %s16, 1
      %p47 = por %p45, %p46
      %p48 = scmp.ne.s32.totalorder %s40, %s43
      %p49 = scmp.eq.s32.totalorder %s16, 0
      %p50 = por %p48, %p49
      %p51 = scmp.ne.s32.totalorder %s40, %s43
      %p52 = scmp.eq.s32.totalorder %s21, 1
      %p53 = por %p51, %p52
      %p54 = scmp.ne.s32.totalorder %s43, %s44
      %p55 = scmp.eq.s32.totalorder %s21, 0
      %p56 = por %p54, %p55
      %p57 = scmp.ne.s32.totalorder %s43, %s44
      %p58 = scmp.eq.s32.totalorder %s22, 1
      %p59 = por %p57, %p58
      %p61 = scmp.ne.s32.totalorder %s44, %s60
      %p62 = scmp.eq.s32.totalorder %s22, 0
      %p63 = por %p61, %p62
      %s65 = sadd.s32 %s64, 1
      %p68 = scmp.eq.s32.totalorder %s16, 1
      %p69 = scmp.ne.s32.totalorder %s64, %s66
      %p70 = scmp.eq.s32.totalorder %s16, 0
      %p71 = por %p69, %p70
      %p72 = scmp.ne.s32.totalorder %s64, %s66
      %p73 = scmp.eq.s32.totalorder %s21, 1
      %p74 = por %p72, %p73
      %p75 = scmp.ne.s32.totalorder %s66, %s67
      %p76 = scmp.eq.s32.totalorder %s21, 0
      %p77 = por %p75, %p76
      %p78 = scmp.ne.s32.totalorder %s66, %s67
      %p79 = scmp.eq.s32.totalorder %s22, 1
      %p80 = por %p78, %p79
      %p82 = scmp.ne.s32.totalorder %s67, %s81
      %p83 = scmp.eq.s32.totalorder %s22, 0
      %p84 = por %p82, %p83
      %s86 = sadd.s32 %s85, 1
      %p89 = scmp.eq.s32.totalorder %s16, 1
      %p90 = scmp.ne.s32.totalorder %s85, %s87
      %p91 = scmp.eq.s32.totalorder %s16, 0
      %p92 = por %p90, %p91
      %p93 = scmp.ne.s32.totalorder %s85, %s87
      %p94 = scmp.eq.s32.totalorder %s21, 1
      %p95 = por %p93, %p94
      %p96 = scmp.ne.s32.totalorder %s87, %s88
      %p97 = scmp.eq.s32.totalorder %s21, 0
      %p98 = por %p96, %p97
      %p99 = scmp.ne.s32.totalorder %s87, %s88
      %p100 = scmp.eq.s32.totalorder %s22, 1
      %p101 = por %p99, %p100
      %p103 = scmp.ne.s32.totalorder %s88, %s102
      %p104 = scmp.eq.s32.totalorder %s22, 0
      %p105 = por %p103, %p104
      %s107 = sadd.s32 %s106, 1
      %p110 = scmp.eq.s32.totalorder %s16, 1
      %p111 = scmp.ne.s32.totalorder %s106, %s108
      %p112 = scmp.eq.s32.totalorder %s16, 0
      %p113 = por %p111, %p112
      %p114 = scmp.ne.s32.totalorder %s106, %s108
      %p115 = scmp.eq.s32.totalorder %s21, 1
      %p116 = por %p114, %p115
      %p117 = scmp.ne.s32.totalorder %s108, %s109
      %p118 = scmp.eq.s32.totalorder %s21, 0
      %p119 = por %p117, %p118
      %p120 = scmp.ne.s32.totalorder %s108, %s109
      %p121 = scmp.eq.s32.totalorder %s22, 1
      %p122 = por %p120, %p121
      %p124 = scmp.ne.s32.totalorder %s109, %s123
      %p125 = scmp.eq.s32.totalorder %s22, 0
      %p126 = por %p124, %p125
      %s128 = sadd.s32 %s127, 1
      %p131 = scmp.eq.s32.totalorder %s16, 1
      %p132 = scmp.ne.s32.totalorder %s127, %s129
      %p133 = scmp.eq.s32.totalorder %s16, 0
      %p134 = por %p132, %p133
      %p135 = scmp.ne.s32.totalorder %s127, %s129
      %p136 = scmp.eq.s32.totalorder %s21, 1
      %p137 = por %p135, %p136
      %p138 = scmp.ne.s32.totalorder %s129, %s130
      %p139 = scmp.eq.s32.totalorder %s21, 0
      %p140 = por %p138, %p139
      %p141 = scmp.ne.s32.totalorder %s129, %s130
      %p142 = scmp.eq.s32.totalorder %s22, 1
      %p143 = por %p141, %p142
      %p145 = scmp.ne.s32.totalorder %s130, %s144
      %p146 = scmp.eq.s32.totalorder %s22, 0
      %p147 = por %p145, %p146
      %s149 = sadd.s32 %s148, 1
      %p152 = scmp.eq.s32.totalorder %s16, 1
      %p153 = scmp.ne.s32.totalorder %s148, %s150
      %p154 = scmp.eq.s32.totalorder %s16, 0
      %p155 = por %p153, %p154
      %p156 = scmp.ne.s32.totalorder %s148, %s150
      %p157 = scmp.eq.s32.totalorder %s21, 1
      %p158 = por %p156, %p157
      %p159 = scmp.ne.s32.totalorder %s150, %s151
      %p160 = scmp.eq.s32.totalorder %s21, 0
      %p161 = por %p159, %p160
      %p162 = scmp.ne.s32.totalorder %s150, %s151
      %p163 = scmp.eq.s32.totalorder %s22, 1
      %p164 = por %p162, %p163
      %p166 = scmp.ne.s32.totalorder %s151, %s165
      %p167 = scmp.eq.s32.totalorder %s22, 0
      %p168 = por %p166, %p167
      %s170 = sadd.s32 %s169, 1
      %p173 = scmp.eq.s32.totalorder %s16, 1
      %p174 = scmp.ne.s32.totalorder %s169, %s171
      %p175 = scmp.eq.s32.totalorder %s16, 0
      %p176 = por %p174, %p175
      %p177 = scmp.ne.s32.totalorder %s169, %s171
      %p178 = scmp.eq.s32.totalorder %s21, 1
      %p179 = por %p177, %p178
      %p180 = scmp.ne.s32.totalorder %s171, %s172
      %p181 = scmp.eq.s32.totalorder %s21, 0
      %p182 = por %p180, %p181
      %p183 = scmp.ne.s32.totalorder %s171, %s172
      %p184 = scmp.eq.s32.totalorder %s22, 1
      %p185 = por %p183, %p184
      %p187 = scmp.ne.s32.totalorder %s172, %s186
      %p188 = scmp.eq.s32.totalorder %s22, 0
      %p189 = por %p187, %p188
      %s190 = ssub.s32 %s23, %s35
      %s191 = ssub.s32 %s24, %s31
      %s192 = sor.u32 %s190, %s191
      %p193 = scmp.eq.s32.totalorder %s192, 0
      %s195 = sadd.s32 %s194, 1
      %s196 = scalar_select %p193, %s194, %s195
      %p199 = pneg %p193
      %p200 = scmp.eq.s32.totalorder %s16, 1
      %p201 = por %p199, %p200
      %p202 = scmp.ne.s32.totalorder %s194, %s197
      %p203 = scmp.eq.s32.totalorder %s16, 0
      %p204 = por %p202, %p203
      %p205 = scmp.ne.s32.totalorder %s194, %s197
      %p206 = scmp.eq.s32.totalorder %s21, 1
      %p207 = por %p205, %p206
      %p208 = scmp.ne.s32.totalorder %s197, %s198
      %p209 = scmp.eq.s32.totalorder %s21, 0
      %p210 = por %p208, %p209
      %p211 = scmp.ne.s32.totalorder %s197, %s198
      %p212 = scmp.eq.s32.totalorder %s22, 1
      %p213 = por %p211, %p212
      %p215 = scmp.ne.s32.totalorder %s198, %s214
      %p216 = scmp.eq.s32.totalorder %s22, 0
      %p217 = por %p215, %p216
      %p218 = scmp.le.s32.totalorder 1, %s16
      %p219 = scmp.lt.s32.totalorder %s16, 3
      %p220 = pnand %p218, %p219
      %p221 = pneg %p220
      // Predicated region
      $region9: #{respath_forward_pallas.1} parent=5 // pred_check
        _
      $region10: #{respath_forward_pallas.1} parent=5 // pred_check_branch
        %223 = sbr.rel (%p220) target = $region12
      $region11: #{respath_forward_pallas.1} parent=5 // pred_region
        %s224 = ssub.s32 %s16, 1
        // Predicated region
        $region13: #{respath_forward_pallas.1} parent=11 // pred_check
          %p225 = pneg %p77
        $region14: #{respath_forward_pallas.1} parent=11 // pred_check_branch
          %227 = sbr.rel (%p225) target = $region16
        $region15: #{respath_forward_pallas.1} parent=11 // pred_region
          _
        $region16: #{respath_forward_pallas.1} parent=11 // pred_fallthru
          _
        // Predicated region
        $region17: #{respath_forward_pallas.1} parent=11 // pred_check
          %p228 = pneg %p98
        $region18: #{respath_forward_pallas.1} parent=11 // pred_check_branch
          %230 = sbr.rel (%p228) target = $region20
        $region19: #{respath_forward_pallas.1} parent=11 // pred_region
          _
        $region20: #{respath_forward_pallas.1} parent=11 // pred_fallthru
          _
        // Predicated region
        $region21: #{respath_forward_pallas.1} parent=11 // pred_check
          %p231 = pneg %p119
        $region22: #{respath_forward_pallas.1} parent=11 // pred_check_branch
          %233 = sbr.rel (%p231) target = $region24
        $region23: #{respath_forward_pallas.1} parent=11 // pred_region
          _
        $region24: #{respath_forward_pallas.1} parent=11 // pred_fallthru
          _
        // Predicated region
        $region25: #{respath_forward_pallas.1} parent=11 // pred_check
          %p234 = pneg %p140
        $region26: #{respath_forward_pallas.1} parent=11 // pred_check_branch
          %236 = sbr.rel (%p234) target = $region28
        $region27: #{respath_forward_pallas.1} parent=11 // pred_region
          _
        $region28: #{respath_forward_pallas.1} parent=11 // pred_fallthru
          _
        // Predicated region
        $region29: #{respath_forward_pallas.1} parent=11 // pred_check
          %p237 = pneg %p161
        $region30: #{respath_forward_pallas.1} parent=11 // pred_check_branch
          %239 = sbr.rel (%p237) target = $region32
        $region31: #{respath_forward_pallas.1} parent=11 // pred_region
          _
        $region32: #{respath_forward_pallas.1} parent=11 // pred_fallthru
          _
        // Predicated region
        $region33: #{respath_forward_pallas.1} parent=11 // pred_check
          %p240 = pneg %p182
        $region34: #{respath_forward_pallas.1} parent=11 // pred_check_branch
          %242 = sbr.rel (%p240) target = $region36
        $region35: #{respath_forward_pallas.1} parent=11 // pred_region
          _
        $region36: #{respath_forward_pallas.1} parent=11 // pred_fallthru
          _
      $region12: #{respath_forward_pallas.1} parent=5 // pred_fallthru
        _
      %p243 = scmp.lt.s32.totalorder %s16, 2
      // Predicated region
      $region37: #{respath_forward_pallas.1} parent=5 // pred_check
        %p244 = pneg %p243
      $region38: #{respath_forward_pallas.1} parent=5 // pred_check_branch
        %246 = sbr.rel (%p244) target = $region40
      $region39: #{respath_forward_pallas.1} parent=5 // pred_region
        // Predicated region
        $region41: #{respath_forward_pallas.1} parent=39 // pred_check
          %p247 = pneg %p50
        $region42: #{respath_forward_pallas.1} parent=39 // pred_check_branch
          %249 = sbr.rel (%p247) target = $region44
        $region43: #{respath_forward_pallas.1} parent=39 // pred_region
          %p250 = scmp.lt.s32.totalorder %s23, 1
          %s251 = scalar_select %p250, %s23, 1
          %p252 = scmp.lt.s32.totalorder %s24, 0
          %s253 = scalar_select %p252, %s24, 0
          %s254 = sadd.s32 %s253, %s251
          %s255 = smul.addr %s254, 8
          %s256 = scalar_lea.vmem %s0, %s255
        $region44: #{respath_forward_pallas.1} parent=39 // pred_fallthru
          _
      $region40: #{respath_forward_pallas.1} parent=5 // pred_fallthru
        _
      %p257 = scmp.le.s32.totalorder 1, %s16
      %p258 = scmp.lt.s32.totalorder %s16, 3
      %p259 = pnand %p257, %p258
      %p260 = pneg %p259
      // Predicated region
      $region45: #{respath_forward_pallas.1} parent=5 // pred_check
        _
      $region46: #{respath_forward_pallas.1} parent=5 // pred_check_branch
        %262 = sbr.rel (%p259) target = $region48
      $region47: #{respath_forward_pallas.1} parent=5 // pred_region
        %s263 = ssub.s32 %s16, 1
        %p264 = scmp.lt.s32.totalorder %s25, 1
        %s265 = scalar_select %p264, %s25, 1
        %p266 = scmp.lt.s32.totalorder %s26, 0
        %s267 = scalar_select %p266, %s26, 0
        %s268 = sadd.s32 %s267, %s265
        %s269 = smul.addr %s268, 8
        %s270 = scalar_lea.vmem %s0, %s269
        %p271 = pneg %p56
        %p272 = pneg %p53
        %p273 = pneg %p77
        %p274 = pneg %p74
        %p275 = pneg %p98
        %p276 = pneg %p95
        %p277 = pneg %p119
        %p278 = pneg %p116
        %p279 = pneg %p140
        %p280 = pneg %p137
        %p281 = pneg %p161
        %p282 = pneg %p158
        %p283 = pneg %p182
        %p284 = pneg %p179
        %p285 = pneg %p210
        %p286 = pneg %p207
        %s287 = sand.u32 %s197, 1
        %s288 = scalar_lea.sflag [#allocation3], %s287
        %s289 = sand.u32 %s197, 1
        %s290 = smul.addr %s289, 8
        %s291 = scalar_lea.vmem [#allocation2], %s290
        %p292 = scmp.lt.s32.totalorder %s25, 1
        %s293 = scalar_select %p292, %s25, 1
        %p294 = scmp.lt.s32.totalorder %s26, 0
        %s295 = scalar_select %p294, %s26, 0
        %s296 = sadd.s32 %s295, %s293
        %s297 = smul.addr %s296, 8
        %s298 = scalar_lea.vmem %s0, %s297
        %v299 = vld [vmem:[%s298] sm:$0xff]
        %301 = vrot.lane.b32.xlu0 %v299, 127
        %v302 = vpop.permute.xlu0 %301
        %304 = vrot.lane.b32.xlu0 %v299, 126
        %v305 = vpop.permute.xlu0 %304
        %307 = vrot.lane.b32.xlu0 %v299, 125
        %v308 = vpop.permute.xlu0 %307
        %310 = vrot.lane.b32.xlu0 %v299, 124
        %v311 = vpop.permute.xlu0 %310
        %313 = vrot.lane.b32.xlu0 %v299, 123
        %v314 = vpop.permute.xlu0 %313
        %316 = vrot.lane.b32.xlu0 %v299, 122
        %v317 = vpop.permute.xlu0 %316
        %319 = vrot.lane.b32.xlu0 %v299, 121
        %v320 = vpop.permute.xlu0 %319
        %322 = vrot.lane.b32.xlu0 %v299, 120
        %v323 = vpop.permute.xlu0 %322
        %v325 = vld [vmem:[%s1] sm:$0xff]
        %v326 = vld [vmem:[%s1 + $0x8] sm:$0xff]
        %vm327 = vcmask 588800
        %v329 = vsel %vm327, %v325, 0
        %v332 = vsel %vm327, %v326, 0
        %334 = vmatprep.subr.mxu0 0.0
        %335 = vmatpush1.msra.mxu0 0.0
        %336 = vmatprep.subr.mxu0 0.0
        %337 = vmatpush1.msra.mxu0 0.0
        %338 = vmatprep.subr.mxu0 0.0
        %339 = vmatpush1.msra.mxu0 0.0
        %340 = vmatprep.subr.mxu0 0.0
        %341 = vmatpush1.msra.mxu0 0.0
        %342 = vmatprep.subr.mxu0 0.0
        %343 = vmatpush1.msra.mxu0 0.0
        %344 = vmatprep.subr.mxu0 0.0
        %345 = vmatpush1.msra.mxu0 0.0
        %346 = vmatprep.subr.mxu0 0.0
        %347 = vmatpush1.msra.mxu0 0.0
        %348 = vmatprep.subr.mxu0 0.0
        %349 = vmatpush1.msra.mxu0 %v323
        %350 = vmatprep.subr.mxu0 0.0
        %351 = vmatpush1.msra.mxu0 %v320
        %352 = vmatprep.subr.mxu0 0.0
        %353 = vmatpush1.msra.mxu0 %v317
        %354 = vmatprep.subr.mxu0 0.0
        %355 = vmatpush1.msra.mxu0 %v314
        %356 = vmatprep.subr.mxu0 0.0
        %357 = vmatpush1.msra.mxu0 %v311
        %358 = vmatprep.subr.mxu0 0.0
        %359 = vmatpush1.msra.mxu0 %v308
        %360 = vmatprep.subr.mxu0 0.0
        %361 = vmatpush1.msra.mxu0 %v305
        %362 = vmatprep.subr.mxu0 0.0
        %363 = vmatpush1.msra.mxu0 %v302
        %364 = vmatprep.subr.mxu0 0.0
        %365 = vmatpush1.msra.mxu0 %v299
        %366 = vmatprep.subr.mxu0 0.0
        %367 = vmatpush2.msra.mxu0 0.0
        %368 = vmatprep.subr.mxu0 0.0
        %369 = vmatpush2.msra.mxu0 0.0
        %370 = vmatprep.subr.mxu0 0.0
        %371 = vmatpush2.msra.mxu0 0.0
        %372 = vmatprep.subr.mxu0 0.0
        %373 = vmatpush2.msra.mxu0 0.0
        %374 = vmatprep.subr.mxu0 0.0
        %375 = vmatpush2.msra.mxu0 0.0
        %376 = vmatprep.subr.mxu0 0.0
        %377 = vmatpush2.msra.mxu0 0.0
        %378 = vmatprep.subr.mxu0 0.0
        %379 = vmatpush2.msra.mxu0 0.0
        %380 = vmatprep.subr.mxu0 0.0
        %381 = vmatpush2.msra.mxu0 0.0
        %382 = vmatprep.subr.mxu0 0.0
        %383 = vmatpush2.msra.mxu0 0.0
        %384 = vmatprep.subr.mxu0 0.0
        %385 = vmatpush2.msra.mxu0 0.0
        %386 = vmatprep.subr.mxu0 0.0
        %387 = vmatpush2.msra.mxu0 0.0
        %388 = vmatprep.subr.mxu0 0.0
        %389 = vmatpush2.msra.mxu0 0.0
        %390 = vmatprep.subr.mxu0 0.0
        %391 = vmatpush2.msra.mxu0 0.0
        %392 = vmatprep.subr.mxu0 0.0
        %393 = vmatpush2.msra.mxu0 0.0
        %394 = vmatprep.subr.mxu0 0.0
        %395 = vmatpush2.msra.mxu0 0.0
        %396 = vmatprep.subr.mxu0 0.0
        %397 = vmatpush2.msra.mxu0 0.0
        %398 = vmatprep.mubr.f32.mxu0 0.0
        %399 = vmatmul.mubr.f32.gmra.mxu0 %v329
        %v400 = vpop.f32.mrf.mxu0
        %v401 = vadd.f32 0.0, %v400
        %v402 = vpop.f32.mrf.mxu0
        %403 = vmatprep.mubr.f32.mxu0 0.0
        %404 = vmatmul.mubr.f32.gmra.mxu0 %v332
        %v405 = vpop.f32.mrf.mxu0
        %v406 = vadd.f32 0.0, %v405
        %v407 = vpop.f32.mrf.mxu0
        %408 = vdwg.mxu0
        %v409 = vld [vmem:[%s2] sm:$0xff]
        %411 = vset.pattern.permute.xlu0 0
        %412 = vperm.xlu0 %411, %v409
        %v413 = vpop.permute.xlu0 %412
        %v415 = vadd.f32 %v401, %v413
        %v416 = vmax.f32 %v415, 0.0
        %417 = vset.pattern.permute.xlu0 1
        %418 = vperm.xlu0 %417, %v409
        %v419 = vpop.permute.xlu0 %418
        %v421 = vadd.f32 %v406, %v419
        %v422 = vadd.f32 %v421, %v416
        %v423 = vmax.f32 %v422, 0.0
        %424 = vset.pattern.permute.xlu0 2
        %425 = vperm.xlu0 %424, %v409
        %v426 = vpop.permute.xlu0 %425
        %v428 = vmul.f32 %v423, %v426
        %429 = vset.pattern.permute.xlu0 3
        %430 = vperm.xlu0 %429, %v409
        %v431 = vpop.permute.xlu0 %430
        %v433 = vadd.f32 %v428, %v431
        %s434 = smul.u32 %s26, 16
        %s435 = sadd.s32 %s434, 4294967288
        %v436 = vlaneseq
        %v437 = vand.u32 %v436, 127
        %v438 = vstv %s435
        %v439 = vadd.s32 %v438, %v437
        %vm440 = vcmp.ge.s32.totalorder %v439, 0
        %vm441 = vcmp.lt.s32.totalorder %v439, 16
        %vm442 = vmand %vm440, %vm441
        %v443 = vsel %vm442, 1, 0
        %vm444 = vcmp.eq.s32.totalorder %v443, 1
        %v445 = vsel %vm444, %v433, 0.0
        %447 = vrot.lane.b32.xlu0 %v445, 127
        %v448 = vpop.permute.xlu0 %447
        %450 = vrot.lane.b32.xlu0 %v445, 126
        %v451 = vpop.permute.xlu0 %450
        %453 = vrot.lane.b32.xlu0 %v445, 125
        %v454 = vpop.permute.xlu0 %453
        %456 = vrot.lane.b32.xlu0 %v445, 124
        %v457 = vpop.permute.xlu0 %456
        %459 = vrot.lane.b32.xlu0 %v445, 123
        %v460 = vpop.permute.xlu0 %459
        %462 = vrot.lane.b32.xlu0 %v445, 122
        %v463 = vpop.permute.xlu0 %462
        %465 = vrot.lane.b32.xlu0 %v445, 121
        %v466 = vpop.permute.xlu0 %465
        %468 = vrot.lane.b32.xlu0 %v445, 120
        %v469 = vpop.permute.xlu0 %468
        %v471 = vld [vmem:[%s3] sm:$0xff]
        %v472 = vld [vmem:[%s3 + $0x8] sm:$0xff]
        %v474 = vsel %vm327, %v471, 0
        %v477 = vsel %vm327, %v472, 0
        %479 = vmatprep.subr.mxu0 0.0
        %480 = vmatpush1.msra.mxu0 0.0
        %481 = vmatprep.subr.mxu0 0.0
        %482 = vmatpush1.msra.mxu0 0.0
        %483 = vmatprep.subr.mxu0 0.0
        %484 = vmatpush1.msra.mxu0 0.0
        %485 = vmatprep.subr.mxu0 0.0
        %486 = vmatpush1.msra.mxu0 0.0
        %487 = vmatprep.subr.mxu0 0.0
        %488 = vmatpush1.msra.mxu0 0.0
        %489 = vmatprep.subr.mxu0 0.0
        %490 = vmatpush1.msra.mxu0 0.0
        %491 = vmatprep.subr.mxu0 0.0
        %492 = vmatpush1.msra.mxu0 0.0
        %493 = vmatprep.subr.mxu0 0.0
        %494 = vmatpush1.msra.mxu0 %v469
        %495 = vmatprep.subr.mxu0 0.0
        %496 = vmatpush1.msra.mxu0 %v466
        %497 = vmatprep.subr.mxu0 0.0
        %498 = vmatpush1.msra.mxu0 %v463
        %499 = vmatprep.subr.mxu0 0.0
        %500 = vmatpush1.msra.mxu0 %v460
        %501 = vmatprep.subr.mxu0 0.0
        %502 = vmatpush1.msra.mxu0 %v457
        %503 = vmatprep.subr.mxu0 0.0
        %504 = vmatpush1.msra.mxu0 %v454
        %505 = vmatprep.subr.mxu0 0.0
        %506 = vmatpush1.msra.mxu0 %v451
        %507 = vmatprep.subr.mxu0 0.0
        %508 = vmatpush1.msra.mxu0 %v448
        %509 = vmatprep.subr.mxu0 0.0
        %510 = vmatpush1.msra.mxu0 %v445
        %511 = vmatprep.subr.mxu0 0.0
        %512 = vmatpush2.msra.mxu0 0.0
        %513 = vmatprep.subr.mxu0 0.0
        %514 = vmatpush2.msra.mxu0 0.0
        %515 = vmatprep.subr.mxu0 0.0
        %516 = vmatpush2.msra.mxu0 0.0
        %517 = vmatprep.subr.mxu0 0.0
        %518 = vmatpush2.msra.mxu0 0.0
        %519 = vmatprep.subr.mxu0 0.0
        %520 = vmatpush2.msra.mxu0 0.0
        %521 = vmatprep.subr.mxu0 0.0
        %522 = vmatpush2.msra.mxu0 0.0
        %523 = vmatprep.subr.mxu0 0.0
        %524 = vmatpush2.msra.mxu0 0.0
        %525 = vmatprep.subr.mxu0 0.0
        %526 = vmatpush2.msra.mxu0 0.0
        %527 = vmatprep.subr.mxu0 0.0
        %528 = vmatpush2.msra.mxu0 0.0
        %529 = vmatprep.subr.mxu0 0.0
        %530 = vmatpush2.msra.mxu0 0.0
        %531 = vmatprep.subr.mxu0 0.0
        %532 = vmatpush2.msra.mxu0 0.0
        %533 = vmatprep.subr.mxu0 0.0
        %534 = vmatpush2.msra.mxu0 0.0
        %535 = vmatprep.subr.mxu0 0.0
        %536 = vmatpush2.msra.mxu0 0.0
        %537 = vmatprep.subr.mxu0 0.0
        %538 = vmatpush2.msra.mxu0 0.0
        %539 = vmatprep.subr.mxu0 0.0
        %540 = vmatpush2.msra.mxu0 0.0
        %541 = vmatprep.subr.mxu0 0.0
        %542 = vmatpush2.msra.mxu0 0.0
        %543 = vmatprep.mubr.f32.mxu0 0.0
        %544 = vmatmul.mubr.f32.gmra.mxu0 %v474
        %v545 = vpop.f32.mrf.mxu0
        %v546 = vadd.f32 0.0, %v545
        %v547 = vpop.f32.mrf.mxu0
        %548 = vmatprep.mubr.f32.mxu0 0.0
        %549 = vmatmul.mubr.f32.gmra.mxu0 %v477
        %v550 = vpop.f32.mrf.mxu0
        %v551 = vadd.f32 0.0, %v550
        %v552 = vpop.f32.mrf.mxu0
        %553 = vdwg.mxu0
        %v554 = vld [vmem:[%s4] sm:$0xff]
        %556 = vset.pattern.permute.xlu0 0
        %557 = vperm.xlu0 %556, %v554
        %v558 = vpop.permute.xlu0 %557
        %v560 = vadd.f32 %v546, %v558
        %v561 = vmax.f32 %v560, 0.0
        %562 = vset.pattern.permute.xlu0 1
        %563 = vperm.xlu0 %562, %v554
        %v564 = vpop.permute.xlu0 %563
        %v566 = vadd.f32 %v551, %v564
        %v567 = vadd.f32 %v566, %v561
        %v568 = vmax.f32 %v567, 0.0
        %569 = vset.pattern.permute.xlu0 2
        %570 = vperm.xlu0 %569, %v554
        %v571 = vpop.permute.xlu0 %570
        %v573 = vmul.f32 %v568, %v571
        %574 = vset.pattern.permute.xlu0 3
        %575 = vperm.xlu0 %574, %v554
        %v576 = vpop.permute.xlu0 %575
        %v578 = vadd.f32 %v573, %v576
        %s579 = sadd.s32 %s434, 4294967292
        %v580 = vstv %s579
        %v581 = vadd.s32 %v580, %v437
        %vm582 = vcmp.ge.s32.totalorder %v581, 0
        %vm583 = vcmp.lt.s32.totalorder %v581, 16
        %vm584 = vmand %vm582, %vm583
        %v585 = vsel %vm584, 1, 0
        %vm586 = vcmp.eq.s32.totalorder %v585, 1
        %v587 = vsel %vm586, %v578, 0.0
        %589 = vrot.lane.b32.xlu0 %v587, 127
        %v590 = vpop.permute.xlu0 %589
        %592 = vrot.lane.b32.xlu0 %v587, 126
        %v593 = vpop.permute.xlu0 %592
        %595 = vrot.lane.b32.xlu0 %v587, 125
        %v596 = vpop.permute.xlu0 %595
        %598 = vrot.lane.b32.xlu0 %v587, 124
        %v599 = vpop.permute.xlu0 %598
        %601 = vrot.lane.b32.xlu0 %v587, 123
        %v602 = vpop.permute.xlu0 %601
        %604 = vrot.lane.b32.xlu0 %v587, 122
        %v605 = vpop.permute.xlu0 %604
        %607 = vrot.lane.b32.xlu0 %v587, 121
        %v608 = vpop.permute.xlu0 %607
        %610 = vrot.lane.b32.xlu0 %v587, 120
        %v611 = vpop.permute.xlu0 %610
        %v613 = vld [vmem:[%s5] sm:$0xff]
        %v614 = vld [vmem:[%s5 + $0x8] sm:$0xff]
        %v616 = vsel %vm327, %v613, 0
        %v619 = vsel %vm327, %v614, 0
        %621 = vmatprep.subr.mxu0 0.0
        %622 = vmatpush1.msra.mxu0 0.0
        %623 = vmatprep.subr.mxu0 0.0
        %624 = vmatpush1.msra.mxu0 0.0
        %625 = vmatprep.subr.mxu0 0.0
        %626 = vmatpush1.msra.mxu0 0.0
        %627 = vmatprep.subr.mxu0 0.0
        %628 = vmatpush1.msra.mxu0 0.0
        %629 = vmatprep.subr.mxu0 0.0
        %630 = vmatpush1.msra.mxu0 0.0
        %631 = vmatprep.subr.mxu0 0.0
        %632 = vmatpush1.msra.mxu0 0.0
        %633 = vmatprep.subr.mxu0 0.0
        %634 = vmatpush1.msra.mxu0 0.0
        %635 = vmatprep.subr.mxu0 0.0
        %636 = vmatpush1.msra.mxu0 %v611
        %637 = vmatprep.subr.mxu0 0.0
        %638 = vmatpush1.msra.mxu0 %v608
        %639 = vmatprep.subr.mxu0 0.0
        %640 = vmatpush1.msra.mxu0 %v605
        %641 = vmatprep.subr.mxu0 0.0
        %642 = vmatpush1.msra.mxu0 %v602
        %643 = vmatprep.subr.mxu0 0.0
        %644 = vmatpush1.msra.mxu0 %v599
        %645 = vmatprep.subr.mxu0 0.0
        %646 = vmatpush1.msra.mxu0 %v596
        %647 = vmatprep.subr.mxu0 0.0
        %648 = vmatpush1.msra.mxu0 %v593
        %649 = vmatprep.subr.mxu0 0.0
        %650 = vmatpush1.msra.mxu0 %v590
        %651 = vmatprep.subr.mxu0 0.0
        %652 = vmatpush1.msra.mxu0 %v587
        %653 = vmatprep.subr.mxu0 0.0
        %654 = vmatpush2.msra.mxu0 0.0
        %655 = vmatprep.subr.mxu0 0.0
        %656 = vmatpush2.msra.mxu0 0.0
        %657 = vmatprep.subr.mxu0 0.0
        %658 = vmatpush2.msra.mxu0 0.0
        %659 = vmatprep.subr.mxu0 0.0
        %660 = vmatpush2.msra.mxu0 0.0
        %661 = vmatprep.subr.mxu0 0.0
        %662 = vmatpush2.msra.mxu0 0.0
        %663 = vmatprep.subr.mxu0 0.0
        %664 = vmatpush2.msra.mxu0 0.0
        %665 = vmatprep.subr.mxu0 0.0
        %666 = vmatpush2.msra.mxu0 0.0
        %667 = vmatprep.subr.mxu0 0.0
        %668 = vmatpush2.msra.mxu0 0.0
        %669 = vmatprep.subr.mxu0 0.0
        %670 = vmatpush2.msra.mxu0 0.0
        %671 = vmatprep.subr.mxu0 0.0
        %672 = vmatpush2.msra.mxu0 0.0
        %673 = vmatprep.subr.mxu0 0.0
        %674 = vmatpush2.msra.mxu0 0.0
        %675 = vmatprep.subr.mxu0 0.0
        %676 = vmatpush2.msra.mxu0 0.0
        %677 = vmatprep.subr.mxu0 0.0
        %678 = vmatpush2.msra.mxu0 0.0
        %679 = vmatprep.subr.mxu0 0.0
        %680 = vmatpush2.msra.mxu0 0.0
        %681 = vmatprep.subr.mxu0 0.0
        %682 = vmatpush2.msra.mxu0 0.0
        %683 = vmatprep.subr.mxu0 0.0
        %684 = vmatpush2.msra.mxu0 0.0
        %685 = vmatprep.mubr.f32.mxu0 0.0
        %686 = vmatmul.mubr.f32.gmra.mxu0 %v616
        %v687 = vpop.f32.mrf.mxu0
        %v688 = vadd.f32 0.0, %v687
        %v689 = vpop.f32.mrf.mxu0
        %690 = vmatprep.mubr.f32.mxu0 0.0
        %691 = vmatmul.mubr.f32.gmra.mxu0 %v619
        %v692 = vpop.f32.mrf.mxu0
        %v693 = vadd.f32 0.0, %v692
        %v694 = vpop.f32.mrf.mxu0
        %695 = vdwg.mxu0
        %v696 = vld [vmem:[%s6] sm:$0xff]
        %698 = vset.pattern.permute.xlu0 0
        %699 = vperm.xlu0 %698, %v696
        %v700 = vpop.permute.xlu0 %699
        %v702 = vadd.f32 %v688, %v700
        %v703 = vmax.f32 %v702, 0.0
        %704 = vset.pattern.permute.xlu0 1
        %705 = vperm.xlu0 %704, %v696
        %v706 = vpop.permute.xlu0 %705
        %v708 = vadd.f32 %v693, %v706
        %v709 = vadd.f32 %v708, %v703
        %v710 = vmax.f32 %v709, 0.0
        %711 = vset.pattern.permute.xlu0 2
        %712 = vperm.xlu0 %711, %v696
        %v713 = vpop.permute.xlu0 %712
        %v715 = vmul.f32 %v710, %v713
        %716 = vset.pattern.permute.xlu0 3
        %717 = vperm.xlu0 %716, %v696
        %v718 = vpop.permute.xlu0 %717
        %v720 = vadd.f32 %v715, %v718
        %vm721 = vcmask 130048
        %722 = vst.msk [vmem:[%s291] sm:$0xff] %vm721, %v720
        %s723 = sand.u32 %s197, 1
        %s724 = scalar_lea.sflag [#allocation3], %s723
        %s725 = sand.u32 %s197, 1
        %s726 = smul.addr %s725, 8
        %s727 = scalar_lea.vmem [#allocation2], %s726
        // Predicated region
        $region49: #{respath_forward_pallas.1} parent=47 // pred_check
          %p728 = pneg %p207
        $region50: #{respath_forward_pallas.1} parent=47 // pred_check_branch
          %730 = sbr.rel (%p728) target = $region52
        $region51: #{respath_forward_pallas.1} parent=47 // pred_region
          %s732 = ssub.s32 128, 128
          %733 = vsyncadd %s724, %s732
          %s734 = sadd.s32 %s26, %s25
          %s735 = smul.addr %s734, 128
          %s736 = scalar_lea.hbm %s7, %s735
          %s738 = sshll.u32 %s727, 4
          %s739 = int_to_ptr.vmem [resolvable:$true] %s738
          %741 = dma.vmem_to_hbm [thread:$0]  %s739, 128, %s736, %s724
        $region52: #{respath_forward_pallas.1} parent=47 // pred_fallthru
          _
      $region48: #{respath_forward_pallas.1} parent=5 // pred_fallthru
        _
      %p742 = scmp.le.s32.totalorder 2, %s16
      // Predicated region
      $region53: #{respath_forward_pallas.1} parent=5 // pred_check
        %p743 = pneg %p742
      $region54: #{respath_forward_pallas.1} parent=5 // pred_check_branch
        %745 = sbr.rel (%p743) target = $region56
      $region55: #{respath_forward_pallas.1} parent=5 // pred_region
        %s746 = ssub.s32 %s16, 2
        // Predicated region
        $region57: #{respath_forward_pallas.1} parent=55 // pred_check
          %p747 = pneg %p213
        $region58: #{respath_forward_pallas.1} parent=55 // pred_check_branch
          %749 = sbr.rel (%p747) target = $region60
        $region59: #{respath_forward_pallas.1} parent=55 // pred_region
          %s750 = sand.u32 %s198, 1
          %s751 = scalar_lea.sflag [#allocation3], %s750
          %s752 = sand.u32 %s198, 1
          %s753 = smul.addr %s752, 8
          %s754 = scalar_lea.vmem [#allocation2], %s753
          %755 = dma.done %s751, 128
        $region60: #{respath_forward_pallas.1} parent=55 // pred_fallthru
          _
      $region56: #{respath_forward_pallas.1} parent=5 // pred_fallthru
        _
    $region6: #{respath_forward_pallas.1} parent=1 // loop_footer
      %s20 = sadd.s32 1, %s16
    $region7: #{respath_forward_pallas.1} parent=1 // loop_footer_branch
      %15 = sbr.rel target = $region3
    $region8: #{respath_forward_pallas.1} parent=1 // loop_exit
      _
    %756 = vsyncpa [#allocation3], 1
    %s757 = scalar_lea.sflag [#allocation3], 1
    %758 = vsyncpa %s757, 1

</llo_original>
